<compile_context>
chip_gen: v7x
topology: tpu7x:2x2x1
jax: 0.10.0
libtpu: 0.0.40
codegen_flags: <defaults>
</compile_context>

<pallas_src>
import numpy as np
import jax
import jax.numpy as jnp
from jax.experimental import pallas as pl
from jax.experimental.pallas import tpu as pltpu


def _round_up(x, m):
    return ((x + m - 1) // m) * m


def _pick_tile(padded_dim, desired, base):
    """Largest multiple of `base` that divides `padded_dim` and is <= desired."""
    best = base
    t = base
    limit = min(desired, padded_dim)
    while t <= limit:
        if padded_dim % t == 0:
            best = t
        t += base
    return best


def cosine_classifier_kernel(x_ref, w_ref, inv_ref, o_ref):
    # x_ref:   (tm, tk) bf16 input tile
    # w_ref:   (tk, tn) bf16 pre-normalized weight tile
    # inv_ref: (tm, 1)  f32  scale * 1/max(||x_row||, eps)
    # o_ref:   (tm, tn) f32  output tile, resident across k (acts as accumulator)
    k = pl.program_id(2)

    @pl.when(k == 0)
    def _():
        o_ref[...] = jnp.zeros_like(o_ref)

    # Unnormalized dot: bf16 operands, f32 accumulation (native MXU rate).
    o_ref[...] += jnp.dot(x_ref[...], w_ref[...],
                          preferred_element_type=jnp.float32)

    @pl.when(k == pl.num_programs(2) - 1)
    def _():
        # Per-row scaled inverse norm (precomputed in the wrapper) folded in
        # with a single broadcast multiply.
        o_ref[...] = o_ref[...] * inv_ref[...]


def _cosine_forward(x, w_p, scale_f32, *, C, tm, tn, tk, out_dtype):
    """x: (B, F) any float dtype; w_p: (Fp, Cp) bf16 pre-normalized & padded."""
    B, F = x.shape
    Fp, Cp = w_p.shape
    assert F <= Fp and C <= Cp

    Bp = _round_up(B, 8)
    tm_eff = _pick_tile(Bp, tm, 8)

    # --- Per-row scaled inverse norms (one tiny mem-bound pass over x) -----
    # Clamp sum-of-squares at eps^2 to preserve F.normalize's max(norm, 1e-12).
    x_f32 = x.astype(jnp.float32)
    ssq = jnp.sum(x_f32 * x_f32, axis=-1, keepdims=True)
    inv = scale_f32 * jax.lax.rsqrt(jnp.maximum(ssq, jnp.float32(1e-24)))

    # --- Cast x to bf16 and zero-pad (neutral: zero cols add nothing) ------
    x_b = x.astype(jnp.bfloat16)
    if (Bp, Fp) != (B, F):
        x_b = jnp.pad(x_b, ((0, Bp - B), (0, Fp - F)))
    if Bp != B:
        inv = jnp.pad(inv, ((0, Bp - B), (0, 0)))

    grid = (Bp // tm_eff, Cp // tn, Fp // tk)

    out_p = pl.pallas_call(
        cosine_classifier_kernel,
        out_shape=jax.ShapeDtypeStruct((Bp, Cp), jnp.float32),
        grid_spec=pltpu.PrefetchScalarGridSpec(
            num_scalar_prefetch=0,
            grid=grid,
            in_specs=[
                pl.BlockSpec((tm_eff, tk), lambda i, j, k: (i, k)),   # x tiles
                pl.BlockSpec((tk, tn), lambda i, j, k: (k, j)),       # W tiles
                pl.BlockSpec((tm_eff, 1), lambda i, j, k: (i, 0)),    # inv norms
            ],
            out_specs=pl.BlockSpec((tm_eff, tn), lambda i, j, k: (i, j)),
        ),
        compiler_params=pltpu.CompilerParams(
            dimension_semantics=("parallel", "parallel", "arbitrary"),
            vmem_limit_bytes=48 * 1024 * 1024,   # headroom-safe on v7x (64 MiB)
        ),
    )(x_b, w_p, inv)

    return out_p[:B, :C].astype(out_dtype)


def make_cosine_classifier(weight, scale, *, tm=512, tn=1024, tk=2048,
                           out_dtype=jnp.float32):
    """Build a cached forward fn. `weight`: (n_feat, num_classes), `scale`: scalar.

    Weight normalization / bf16 cast / padding happen ONCE here (re-run only
    when the parameter changes), not on every forward call.
    """
    F, C = weight.shape
    Fp = _round_up(F, 128)
    Cp = _round_up(C, 128)
    tn_eff = _pick_tile(Cp, tn, 128)
    tk_eff = _pick_tile(Fp, tk, 128)

    # Column-normalize W (dim=0, eps=1e-12) in f32, then cast to bf16 for MXU.
    w_f32 = jnp.asarray(weight, dtype=jnp.float32)
    w_nrm = jnp.sqrt(jnp.sum(w_f32 * w_f32, axis=0, keepdims=True))
    w_normed = (w_f32 / jnp.maximum(w_nrm, jnp.float32(1e-12))).astype(jnp.bfloat16)
    if (Fp, Cp) != (F, C):
        w_normed = jnp.pad(w_normed, ((0, Fp - F), (0, Cp - C)))
    w_p = jax.device_put(w_normed)
    scale_f32 = jnp.float32(scale)

    def fwd(x, w_p_arg, scale_arg):
        return _cosine_forward(x, w_p_arg, scale_arg, C=C,
                               tm=tm, tn=tn_eff, tk=tk_eff, out_dtype=out_dtype)

    fwd_jit = jax.jit(fwd)

    def forward(x):
        return fwd_jit(x, w_p, scale_f32)

    return forward


def reference(x, weight, scale):
    eps = 1e-12
    x_normed = x / jnp.maximum(jnp.linalg.norm(x, axis=-1, keepdims=True), eps)
    w_normed = weight / jnp.maximum(jnp.linalg.norm(weight, axis=0, keepdims=True), eps)
    return scale * (x_normed @ w_normed)


if __name__ == "__main__":
    key = jax.random.PRNGKey(0)
    k_x, k_w = jax.random.split(key)

    B, n_feat, num_classes = 8, 32, 16

    x = jax.random.normal(k_x, (B, n_feat), dtype=jnp.float32)
    # weight init as in the module: normal(0, sqrt(2/num_classes)), shape (n_feat, num_classes)
    weight = jax.random.normal(k_w, (n_feat, num_classes), dtype=jnp.float32) * np.sqrt(
        2.0 / num_classes)
    scale = 10.0

    forward = make_cosine_classifier(weight, scale)
    out = jax.block_until_ready(forward(x))

    ref = reference(x, weight, jnp.float32(scale))
    # bf16 MXU operands -> loosen tolerance vs the f32 reference.
    np.testing.assert_allclose(np.asarray(out), np.asarray(ref), rtol=2e-2, atol=5e-2)

    print("KERNEL_OK")
</pallas_src>

<mosaic_0001>
module attributes {stable_mosaic.version = 11 : i64} {
  func.func @cosine_classifier_kernel(%arg0: i32, %arg1: i32, %arg2: i32, %arg3: memref<8x128xbf16, #tpu.memory_space<vmem>>, %arg4: memref<128x128xbf16, #tpu.memory_space<vmem>>, %arg5: memref<8x1xf32, #tpu.memory_space<vmem>>, %arg6: memref<8x128xf32, #tpu.memory_space<vmem>>) attributes {dimension_semantics = [#tpu.dimension_semantics<parallel>, #tpu.dimension_semantics<parallel>, #tpu.dimension_semantics<arbitrary>], iteration_bounds = array<i64: 1, 1, 1>, scalar_prefetch = 0 : i64, scratch_operands = 0 : i64, tpu.core_type = #tpu.core_type<tc>, window_params = [{transform_indices = @transform_0, window_bounds = array<i64: 8, 128>}, {transform_indices = @transform_1, window_bounds = array<i64: 128, 128>}, {transform_indices = @transform_2, window_bounds = array<i64: 8, 1>}, {transform_indices = @transform_3, window_bounds = array<i64: 8, 128>}]} {
    %c0_i32 = arith.constant 0 : i32
    %0 = arith.cmpi eq, %arg2, %c0_i32 : i32
    %1 = arith.extui %0 : i1 to i32
    %c0_i32_0 = arith.constant 0 : i32
    %2 = arith.cmpi ne, %1, %c0_i32_0 : i32
    scf.if %2 {
      %cst_10 = arith.constant 0.000000e+00 : f32
      %12 = vector.broadcast %cst_10 : f32 to vector<8x128xf32>
      %c0_11 = arith.constant 0 : index
      %c0_12 = arith.constant 0 : index
      %13 = vector.load %arg6[%c0_11, %c0_12] : memref<8x128xf32, #tpu.memory_space<vmem>>, vector<8x128xf32>
      tpu.vector_store %arg6[%c0_11, %c0_12], %12 {strides = array<i32>} : memref<8x128xf32, #tpu.memory_space<vmem>>, vector<8x128xf32>,
    } else {
    }
    %c0 = arith.constant 0 : index
    %c0_1 = arith.constant 0 : index
    %3 = vector.load %arg6[%c0, %c0_1] : memref<8x128xf32, #tpu.memory_space<vmem>>, vector<8x128xf32>
    %c0_2 = arith.constant 0 : index
    %c0_3 = arith.constant 0 : index
    %4 = vector.load %arg3[%c0_2, %c0_3] : memref<8x128xbf16, #tpu.memory_space<vmem>>, vector<8x128xbf16>
    %c0_4 = arith.constant 0 : index
    %c0_5 = arith.constant 0 : index
    %5 = vector.load %arg4[%c0_4, %c0_5] : memref<128x128xbf16, #tpu.memory_space<vmem>>, vector<128x128xbf16>
    %cst = arith.constant dense<0.000000e+00> : vector<8x128xf32>
    %6 = tpu.matmul %4, %5, %cst {dimension_numbers = #tpu.dot_dimension_numbers<[1], [0], [0], [1], [0, 0, 1, 1], [], []>} : vector<8x128xbf16>, vector<128x128xbf16>, vector<8x128xf32> -> vector<8x128xf32>
    %7 = arith.addf %3, %6 : vector<8x128xf32>
    %c0_6 = arith.constant 0 : index
    %c0_7 = arith.constant 0 : index
    %8 = vector.load %arg6[%c0_6, %c0_7] : memref<8x128xf32, #tpu.memory_space<vmem>>, vector<8x128xf32>
    tpu.vector_store %arg6[%c0_6, %c0_7], %7 {strides = array<i32>} : memref<8x128xf32, #tpu.memory_space<vmem>>, vector<8x128xf32>,
    %c0_i32_8 = arith.constant 0 : i32
    %9 = arith.cmpi eq, %arg2, %c0_i32_8 : i32
    %10 = arith.extui %9 : i1 to i32
    %c0_i32_9 = arith.constant 0 : i32
    %11 = arith.cmpi ne, %10, %c0_i32_9 : i32
    scf.if %11 {
      %c0_10 = arith.constant 0 : index
      %c0_11 = arith.constant 0 : index
      %12 = vector.load %arg6[%c0_10, %c0_11] : memref<8x128xf32, #tpu.memory_space<vmem>>, vector<8x128xf32>
      %c0_12 = arith.constant 0 : index
      %c0_13 = arith.constant 0 : index
      %13 = vector.load %arg5[%c0_12, %c0_13] : memref<8x1xf32, #tpu.memory_space<vmem>>, vector<8x1xf32>
      %14 = vector.broadcast %13 : vector<8x1xf32> to vector<8x128xf32>
      %15 = arith.mulf %12, %14 : vector<8x128xf32>
      %c0_14 = arith.constant 0 : index
      %c0_15 = arith.constant 0 : index
      %16 = vector.load %arg6[%c0_14, %c0_15] : memref<8x128xf32, #tpu.memory_space<vmem>>, vector<8x128xf32>
      tpu.vector_store %arg6[%c0_14, %c0_15], %15 {strides = array<i32>} : memref<8x128xf32, #tpu.memory_space<vmem>>, vector<8x128xf32>,
    } else {
    }
    return
  }
  func.func @transform_0(%arg0: i32, %arg1: i32, %arg2: i32) -> (i32, i32) {
    %c0_i32 = arith.constant 0 : i32
    return %arg0, %arg2 : i32, i32
  }
  func.func @transform_1(%arg0: i32, %arg1: i32, %arg2: i32) -> (i32, i32) {
    %c0_i32 = arith.constant 0 : i32
    return %arg2, %arg1 : i32, i32
  }
  func.func @transform_2(%arg0: i32, %arg1: i32, %arg2: i32) -> (i32, i32) {
    %c0_i32 = arith.constant 0 : i32
    %c0_i32_0 = arith.constant 0 : i32
    return %arg0, %c0_i32 : i32, i32
  }
  func.func @transform_3(%arg0: i32, %arg1: i32, %arg2: i32) -> (i32, i32) {
    %c0_i32 = arith.constant 0 : i32
    return %arg0, %arg1 : i32, i32
  }
}

</mosaic_0001>

<llo_original>
// kernel: fwd.1
$region0: #{fwd.1}
  #allocation0 [shape = 'u32[]', space=smem, size = 0x4, offset = 0x4, fixed_abs, tag = 'smem constant byte address 0x4 - core index']
  #allocation1 [shape = 'u32[144,128]{1,0:T(1,128)}', space=vmem, size = 0x12000, scoped, tag = 'internal scratch']
  %s0 = inlined_call_operand.vmem [shape: bf16[8,128], index: 0, kind: input, shape index: {}]
  %s1 = inlined_call_operand.hbm [shape: bf16[128,128], index: 1, kind: input, shape index: {}]
  %s2 = inlined_call_operand.vmem [shape: f32[8,1], index: 2, kind: input, shape index: {}]
  %s3 = inlined_call_operand.hbm [shape: f32[8,128], index: 3, kind: output, shape index: {}]
  %s4 = sld [smem:[#allocation0]]
  $region34: #{fwd.1} parent=0
    _
  %s6 = ssub.s32 1, %s4
  %s7 = scalar_select 0, %s6, %s4
  $region1: #{fwd.1} parent=0
    #allocation2 [shape = 'u8[32768]{0}', space=vmem, size = 0x8000, scoped, tag = 'input window, operand 1, single buffered']
    #allocation3 [shape = 's32[1]{0}', space=sflag, size = 0x4, scoped, tag = 'scoped memory for fwd.1']
    #allocation4 [shape = 's32[1]{0}', space=sflag, size = 0x4, scoped, tag = 'scoped memory for fwd.1']
    #allocation5 [shape = 'u8[4096]{0}', space=vmem, size = 0x1000, scoped, tag = 'output window, operand 0, single buffered']
    %8 = vsyncpa [#allocation3], 0
    %9 = vsyncpa [#allocation4], 0
    // Predicated region
    $region2: #{fwd.1} parent=1 // pred_check
      _
    $region3: #{fwd.1} parent=1 // pred_check_branch
      %11 = sbr.rel (0) target = $region5
    $region4: #{fwd.1} parent=1 // pred_region
      _
    $region5: #{fwd.1} parent=1 // pred_fallthru
      _
    // Predicated region
    $region6: #{fwd.1} parent=1 // pred_check
      _
    $region7: #{fwd.1} parent=1 // pred_check_branch
      %13 = sbr.rel (0) target = $region9
    $region8: #{fwd.1} parent=1 // pred_region
      %s15 = ssub.s32 1024, 1024
      %16 = vsyncadd [#allocation3], %s15
      %s17 = sshll.u32 [#allocation2], 4
      %s18 = int_to_ptr.vmem [resolvable:$true] %s17
      %23 = dma.hbm_to_vmem [thread:$0]  %s1, 1024, %s18, [#allocation3], 64, 64, 4
    $region9: #{fwd.1} parent=1 // pred_fallthru
      _
    // Predicated region
    $region10: #{fwd.1} parent=1 // pred_check
      _
    $region11: #{fwd.1} parent=1 // pred_check_branch
      %25 = sbr.rel (0) target = $region13
    $region12: #{fwd.1} parent=1 // pred_region
      _
    $region13: #{fwd.1} parent=1 // pred_fallthru
      _
    // Predicated region
    $region14: #{fwd.1} parent=1 // pred_check
      _
    $region15: #{fwd.1} parent=1 // pred_check_branch
      %27 = sbr.rel (0) target = $region17
    $region16: #{fwd.1} parent=1 // pred_region
      %28 = dma.done [#allocation3], 1024
    $region17: #{fwd.1} parent=1 // pred_fallthru
      _
    %p30 = scmp.eq.s32.totalorder 0, 0
    // Predicated region
    $region18: #{fwd.1} parent=1 // pred_check
      %p31 = pneg %p30
    $region19: #{fwd.1} parent=1 // pred_check_branch
      %33 = sbr.rel (%p31) target = $region21
    $region20: #{fwd.1} parent=1 // pred_region
      %34 = vst [vmem:[#allocation5] sm:$0xff] 0.0
    $region21: #{fwd.1} parent=1 // pred_fallthru
      _
    %v35 = vld [vmem:[#allocation5] sm:$0xff]
    %v36 = vld [vmem:[%s0] sm:$0xf]
    %v37 = vld [vmem:[#allocation2] sm:$0xf]
    %v38 = vld [vmem:[#allocation2 + $0x4] sm:$0xf]
    %v39 = vld [vmem:[#allocation2 + $0x8] sm:$0xf]
    %v40 = vld [vmem:[#allocation2 + $0xc] sm:$0xf]
    %v41 = vld [vmem:[#allocation2 + $0x10] sm:$0xf]
    %v42 = vld [vmem:[#allocation2 + $0x14] sm:$0xf]
    %v43 = vld [vmem:[#allocation2 + $0x18] sm:$0xf]
    %v44 = vld [vmem:[#allocation2 + $0x1c] sm:$0xf]
    %v45 = vld [vmem:[#allocation2 + $0x20] sm:$0xf]
    %v46 = vld [vmem:[#allocation2 + $0x24] sm:$0xf]
    %v47 = vld [vmem:[#allocation2 + $0x28] sm:$0xf]
    %v48 = vld [vmem:[#allocation2 + $0x2c] sm:$0xf]
    %v49 = vld [vmem:[#allocation2 + $0x30] sm:$0xf]
    %v50 = vld [vmem:[#allocation2 + $0x34] sm:$0xf]
    %v51 = vld [vmem:[#allocation2 + $0x38] sm:$0xf]
    %v52 = vld [vmem:[#allocation2 + $0x3c] sm:$0xf]
    %v69 = vunpack.c.l.b16 %v37
    %v70 = vunpack.c.l.b16 %v38
    %v71 = vunpack.c.l.b16 %v39
    %v72 = vunpack.c.l.b16 %v40
    %v73 = vunpack.c.l.b16 %v41
    %v74 = vunpack.c.l.b16 %v42
    %v75 = vunpack.c.l.b16 %v43
    %v76 = vunpack.c.l.b16 %v44
    %v77 = vunpack.c.l.b16 %v45
    %v78 = vunpack.c.l.b16 %v46
    %v79 = vunpack.c.l.b16 %v47
    %v80 = vunpack.c.l.b16 %v48
    %v81 = vunpack.c.l.b16 %v49
    %v82 = vunpack.c.l.b16 %v50
    %v83 = vunpack.c.l.b16 %v51
    %v84 = vunpack.c.l.b16 %v52
    %v85 = vpack.c.b16 %v70, %v69
    %v86 = vpack.c.b16 %v72, %v71
    %v87 = vpack.c.b16 %v74, %v73
    %v88 = vpack.c.b16 %v76, %v75
    %v89 = vpack.c.b16 %v78, %v77
    %v90 = vpack.c.b16 %v80, %v79
    %v91 = vpack.c.b16 %v82, %v81
    %v92 = vpack.c.b16 %v84, %v83
    %101 = vmatprep.subr.bf16.mxu0 0
    %102 = vmatpush1.bf16.msra.mxu0 %v85
    %103 = vmatprep.subr.bf16.mxu0 0
    %104 = vmatpush1.bf16.msra.mxu0 %v86
    %105 = vmatprep.subr.bf16.mxu0 0
    %106 = vmatpush1.bf16.msra.mxu0 %v87
    %107 = vmatprep.subr.bf16.mxu0 0
    %108 = vmatpush1.bf16.msra.mxu0 %v88
    %109 = vmatprep.subr.bf16.mxu0 0
    %110 = vmatpush1.bf16.msra.mxu0 %v89
    %111 = vmatprep.subr.bf16.mxu0 0
    %112 = vmatpush1.bf16.msra.mxu0 %v90
    %113 = vmatprep.subr.bf16.mxu0 0
    %114 = vmatpush1.bf16.msra.mxu0 %v91
    %115 = vmatprep.subr.bf16.mxu0 0
    %116 = vmatpush1.bf16.msra.mxu0 %v92
    %117 = vmatprep.subr.bf16.mxu0 0
    %118 = vmatpush1.bf16.msra.mxu0 0
    %119 = vmatprep.subr.bf16.mxu0 0
    %120 = vmatpush1.bf16.msra.mxu0 0
    %121 = vmatprep.subr.bf16.mxu0 0
    %122 = vmatpush1.bf16.msra.mxu0 0
    %123 = vmatprep.subr.bf16.mxu0 0
    %124 = vmatpush1.bf16.msra.mxu0 0
    %125 = vmatprep.subr.bf16.mxu0 0
    %126 = vmatpush1.bf16.msra.mxu0 0
    %127 = vmatprep.subr.bf16.mxu0 0
    %128 = vmatpush1.bf16.msra.mxu0 0
    %129 = vmatprep.subr.bf16.mxu0 0
    %130 = vmatpush1.bf16.msra.mxu0 0
    %131 = vmatprep.subr.bf16.mxu0 0
    %132 = vmatpush1.bf16.msra.mxu0 0
    %133 = vmatprep.mubr.bf16.mxu0 0
    %134 = vmatmul.mubr.bf16.gmra.mrb[0].mxu0 %v36
    %v135 = vpop.f32.mrb[0].mxu0
    %v136 = vadd.f32 0.0, %v135
    %v137 = vpop.f32.mrb[0].mxu0
    %v138 = vpop.f32.mrb[0].mxu0
    %v139 = vpop.f32.mrb[0].mxu0
    %140 = vdwg.mxu0
    %v141 = vadd.f32 %v35, %v136
    %142 = vst [vmem:[#allocation5] sm:$0xff] %v141
    // Predicated region
    $region22: #{fwd.1} parent=1 // pred_check
      %p143 = pneg %p30
    $region23: #{fwd.1} parent=1 // pred_check_branch
      %145 = sbr.rel (%p143) target = $region25
    $region24: #{fwd.1} parent=1 // pred_region
      %v146 = vld [vmem:[#allocation5] sm:$0xff]
      %v147 = vld [vmem:[%s2] sm:$0xff]
      %149 = vset.pattern.permute.xlu0 0
      %150 = vperm.xlu0 %149, %v147
      %v151 = vpop.permute.xlu0 %150
      %v153 = vmul.f32 %v146, %v151
      %154 = vst [vmem:[#allocation5] sm:$0xff] %v153
    $region25: #{fwd.1} parent=1 // pred_fallthru
      _
    // Predicated region
    $region26: #{fwd.1} parent=1 // pred_check
      _
    $region27: #{fwd.1} parent=1 // pred_check_branch
      %156 = sbr.rel (0) target = $region29
    $region28: #{fwd.1} parent=1 // pred_region
      %s158 = ssub.s32 128, 128
      %159 = vsyncadd [#allocation4], %s158
      %s161 = sshll.u32 [#allocation5], 4
      %s162 = int_to_ptr.vmem [resolvable:$true] %s161
      %164 = dma.vmem_to_hbm [thread:$0]  %s162, 128, %s3, [#allocation4]
    $region29: #{fwd.1} parent=1 // pred_fallthru
      _
    // Predicated region
    $region30: #{fwd.1} parent=1 // pred_check
      _
    $region31: #{fwd.1} parent=1 // pred_check_branch
      %166 = sbr.rel (0) target = $region33
    $region32: #{fwd.1} parent=1 // pred_region
      %167 = dma.done [#allocation4], 128
    $region33: #{fwd.1} parent=1 // pred_fallthru
      _
    %168 = vsyncpa [#allocation3], 1
    %169 = vsyncpa [#allocation4], 1

</llo_original>
